<compile_context>
chip_gen: v5e
topology: v5e:2x2
jax: 0.10.0
libtpu: 0.0.40
codegen_flags: <defaults>
</compile_context>

<pallas_src>
from functools import partial
from typing import NamedTuple

import jax
import jax.numpy as jnp
from jax.experimental import pallas as pl
from jax.experimental.pallas import tpu as pltpu

BN_EPS = 1e-5


# --------------------------------------------------------------------------
# helpers
# --------------------------------------------------------------------------
def _round_up(n, m):
    return ((n + m - 1) // m) * m


def _nbytes(shape, dtype):
    n = 1
    for s in shape:
        n *= int(s)
    return n * jnp.dtype(dtype).itemsize


def _pad2d(a, rows, cols):
    r, c = a.shape
    if r == rows and c == cols:
        return a
    return jnp.pad(a, ((0, rows - r), (0, cols - c)))


def _vmem_cap_bytes():
    """Usable per-kernel VMEM ceiling for the current TPU generation."""
    try:
        cap = int(pltpu.get_tpu_info().vmem_capacity_bytes)
    except Exception:  # query unavailable: assume a 128 MiB part
        cap = 128 << 20
    # headroom for compiler-internal scratch / semaphores:
    # ~48 MiB on 64 MiB parts (v7x), ~100 MiB on 128 MiB parts (v5e/v6e).
    return max(min(int(cap * 0.80), cap - (16 << 20)), 16 << 20)


class MLPGeom(NamedTuple):
    input_dim: int
    hidden_dim: int
    output_dim: int
    d_in_p: int
    h_p: int
    d_out_p: int
    tk: int
    tn: int


# --------------------------------------------------------------------------
# kernel
# --------------------------------------------------------------------------
def _make_kernel(batch, bn_eps):
    """batch = real (unpadded) batch size, baked in statically."""
    inv_b = 1.0 / float(batch)

    def kernel(x_hbm, w1_ref, g_ref, bt_ref, w2_ref, b2_ref, o_ref,
               x_vmem, h_scr, acc_scr, x_sem):
        k = pl.program_id(0)          # hidden tile (outer, Linear2 reduction)
        j = pl.program_id(1)          # output-column tile (inner)

        # ---- one-time: bring activations into a single resident VMEM copy --
        @pl.when((k == 0) & (j == 0))
        def _():
            cp = pltpu.make_async_copy(x_hbm, x_vmem, x_sem)
            cp.start()
            cp.wait()

        # ---- phase A (j == 0): Linear1 for hidden tile k + BatchNorm -------
        @pl.when(j == 0)
        def _():
            # b1 cancels exactly under training-mode BatchNorm (it shifts h
            # and the batch mean identically) -> shifted-sum statistics on
            # x @ w1 alone.  Padded batch rows of x are exactly zero, so they
            # contribute nothing to the sums (no masking needed).
            hc = jnp.dot(x_vmem[...], w1_ref[...],
                         preferred_element_type=jnp.float32)
            mean = jnp.sum(hc, axis=0, keepdims=True) * inv_b
            msq = jnp.sum(hc * hc, axis=0, keepdims=True) * inv_b
            var = jnp.maximum(msq - mean * mean, 0.0)   # biased (training) var
            scale = g_ref[...] * jax.lax.rsqrt(var + bn_eps)
            shift = bt_ref[...] - mean * scale
            # activation is None in the reference config -> no nonlinearity.
            h_scr[...] = (hc * scale + shift).astype(h_scr.dtype)

        # ---- phase B (every step): Linear2 partial product for block j -----
        part = jnp.dot(h_scr[...], w2_ref[...],
                       preferred_element_type=jnp.float32)

        @pl.when(k == 0)
        def _():
            acc_scr[j] = part

        @pl.when(k > 0)
        def _():
            acc_scr[j] = acc_scr[j] + part

        # ---- finalize on the last hidden tile: bias + lane-dense store -----
        @pl.when(k == pl.num_programs(0) - 1)
        def _():
            o_ref[...] = (acc_scr[j] + b2_ref[...]).astype(o_ref.dtype)

    return kernel


# --------------------------------------------------------------------------
# parameter preparation (hoisted out of the per-call path) + forward
# --------------------------------------------------------------------------
def prepare_mlp_params(params, *, tile_h=512, tile_out=512):
    """Pad + bf16-cast the weights ONCE and fix the tiling geometry.

    b1 is intentionally not included: training-mode BatchNorm immediately
    after Linear1 cancels the bias exactly (it only affects running stats,
    which this kernel does not emit).
    """
    assert tile_h % 128 == 0 and tile_out % 128 == 0
    w1, w2 = params["w1"], params["w2"]
    d_in, h = w1.shape
    h2, d_out = w2.shape
    assert h2 == h
    d_in_p = _round_up(d_in, 128)
    tk = min(tile_h, _round_up(h, 128))
    tn = min(tile_out, _round_up(d_out, 128))
    h_p = _round_up(h, tk)
    d_out_p = _round_up(d_out, tn)
    pp = {
        "w1": _pad2d(w1, d_in_p, h_p).astype(jnp.bfloat16),
        "gamma": _pad2d(params["gamma"].reshape(1, -1), 1, h_p).astype(jnp.float32),
        "beta": _pad2d(params["beta"].reshape(1, -1), 1, h_p).astype(jnp.float32),
        "w2": _pad2d(w2, h_p, d_out_p).astype(jnp.bfloat16),
        "b2": _pad2d(params["b2"].reshape(1, -1), 1, d_out_p).astype(jnp.float32),
    }
    geom = MLPGeom(d_in, h, d_out, d_in_p, h_p, d_out_p, tk, tn)
    return pp, geom


@partial(jax.jit, static_argnames=("geom",))
def mlp_forward(x, pp, geom):
    """x: (B, input_dim) f32.  pp/geom from prepare_mlp_params()."""
    b, d_in = x.shape
    assert d_in == geom.input_dim
    b_p = _round_up(b, 16)        # bf16 packs 2 rows / sublane -> 16-row pad
    d_in_p, h_p, d_out_p = geom.d_in_p, geom.h_p, geom.d_out_p
    tk, tn = geom.tk, geom.tn
    nk, nj = h_p // tk, d_out_p // tn

    x_p = _pad2d(x, b_p, d_in_p).astype(jnp.bfloat16)

    in_specs = [
        pl.BlockSpec(memory_space=pl.ANY),                 # x: one manual DMA
        pl.BlockSpec((d_in_p, tk), lambda k, j: (0, k)),   # w1 tile
        pl.BlockSpec((1, tk), lambda k, j: (0, k)),        # gamma
        pl.BlockSpec((1, tk), lambda k, j: (0, k)),        # beta
        pl.BlockSpec((tk, tn), lambda k, j: (k, j)),       # w2 tile
        pl.BlockSpec((1, tn), lambda k, j: (0, j)),        # b2
    ]
    # Clamp the output block index to 0 until the final hidden tile so each
    # output block is visited consecutively and written exactly once.
    out_spec = pl.BlockSpec(
        (b_p, tn), lambda k, j: (0, jnp.where(k == nk - 1, j, 0)))

    scratch = [
        pltpu.VMEM((b_p, d_in_p), jnp.bfloat16),   # resident x (single copy)
        pltpu.VMEM((b_p, tk), jnp.bfloat16),       # normalized hidden tile
        pltpu.VMEM((nj, b_p, tn), jnp.float32),    # Linear2 accumulators
        pltpu.SemaphoreType.DMA(()),               # x copy semaphore
    ]

    vmem_need = (
        _nbytes((b_p, d_in_p), jnp.bfloat16)
        + _nbytes((b_p, tk), jnp.bfloat16)
        + nj * _nbytes((b_p, tn), jnp.float32)
        + 2 * _nbytes((d_in_p, tk), jnp.bfloat16)      # w1 (double-buffered)
        + 2 * 2 * _nbytes((1, tk), jnp.float32)        # gamma, beta
        + 2 * _nbytes((tk, tn), jnp.bfloat16)          # w2
        + 2 * _nbytes((1, tn), jnp.float32)            # b2
        + 2 * _nbytes((b_p, tn), jnp.float32)          # output block
    )
    vmem_limit = int(min(max(vmem_need * 5 // 4 + (2 << 20), 16 << 20),
                         _vmem_cap_bytes()))

    flops = 2 * b_p * (d_in_p * h_p + h_p * d_out_p)
    bytes_accessed = (
        _nbytes((b_p, d_in_p), jnp.bfloat16)
        + _nbytes((d_in_p, h_p), jnp.bfloat16)
        + _nbytes((h_p, d_out_p), jnp.bfloat16)
        + 2 * _nbytes((1, h_p), jnp.float32)
        + _nbytes((1, d_out_p), jnp.float32)
        + _nbytes((b_p, d_out_p), jnp.float32)
    )

    out_p = pl.pallas_call(
        _make_kernel(b, BN_EPS),
        out_shape=jax.ShapeDtypeStruct((b_p, d_out_p), jnp.float32),
        grid_spec=pltpu.PrefetchScalarGridSpec(
            num_scalar_prefetch=0,
            grid=(nk, nj),
            in_specs=in_specs,
            out_specs=out_spec,
            scratch_shapes=scratch,
        ),
        compiler_params=pltpu.CompilerParams(
            # k is the Linear2 reduction axis; j > 0 consumes the hidden tile
            # produced at j == 0 -> both axes stay "arbitrary" (single TC).
            dimension_semantics=("arbitrary", "arbitrary"),
            vmem_limit_bytes=vmem_limit,
        ),
        cost_estimate=pl.CostEstimate(
            flops=int(flops),
            transcendentals=int(h_p),
            bytes_accessed=int(bytes_accessed),
        ),
    )(x_p, pp["w1"], pp["gamma"], pp["beta"], pp["w2"], pp["b2"])

    return out_p[:b, :geom.output_dim]


# --------------------------------------------------------------------------
# init + pure-JAX reference (f32)
# --------------------------------------------------------------------------
def init_mlp_params(key, input_dim, hidden_dim, output_dim):
    """Matches MLP.__init__: weights ~ N(0, 1/sqrt(hidden)), biases = 0,
    BatchNorm gamma=1 / beta=0.  Weights stored pre-transposed as (in, out)."""
    scale = 1.0 / (hidden_dim ** 0.5)
    k1, k2 = jax.random.split(key)
    return {
        "w1": scale * jax.random.normal(k1, (input_dim, hidden_dim), jnp.float32),
        "b1": jnp.zeros((1, hidden_dim), jnp.float32),
        "gamma": jnp.ones((1, hidden_dim), jnp.float32),
        "beta": jnp.zeros((1, hidden_dim), jnp.float32),
        "w2": scale * jax.random.normal(k2, (hidden_dim, output_dim), jnp.float32),
        "b2": jnp.zeros((1, output_dim), jnp.float32),
    }


def mlp_reference(x, params):
    h = x @ params["w1"] + params["b1"]
    mean = jnp.mean(h, axis=0, keepdims=True)
    var = jnp.mean((h - mean) ** 2, axis=0, keepdims=True)  # biased, training
    h = (h - mean) * jax.lax.rsqrt(var + BN_EPS)
    h = h * params["gamma"] + params["beta"]
    return h @ params["w2"] + params["b2"]


if __name__ == "__main__":
    key = jax.random.PRNGKey(0)
    kx, kp = jax.random.split(key)

    # Small, deliberately unaligned shapes: exercises batch padding (12->16),
    # lane padding, the multi-tile hidden reduction and output-column tiling.
    batch, input_dim, hidden_dim, output_dim = 12, 48, 200, 150
    x = jax.random.normal(kx, (batch, input_dim), jnp.float32)
    params = init_mlp_params(kp, input_dim, hidden_dim, output_dim)
    ref = mlp_reference(x, params)

    for tile in (128, 256):   # 2x2 grid (multi-tile) and 1x1 grid (degenerate)
        pp, geom = prepare_mlp_params(params, tile_h=tile, tile_out=tile)
        out = mlp_forward(x, pp, geom)
        jax.block_until_ready(out)
        assert out.shape == (batch, output_dim)
        max_err = float(jnp.max(jnp.abs(out - ref)))
        mean_err = float(jnp.mean(jnp.abs(out - ref)))
        # bf16 MXU operands (f32 accumulation) -> relaxed tolerance vs f32 ref
        assert max_err < 0.15 and mean_err < 0.03, (tile, max_err, mean_err)

    print("KERNEL_OK")
</pallas_src>

<mosaic_0001>
module attributes {stable_mosaic.version = 11 : i64} {
  func.func @kernel(%arg0: i32, %arg1: i32, %arg2: memref<16x128xbf16, #tpu.memory_space<any>>, %arg3: memref<128x128xbf16, #tpu.memory_space<vmem>>, %arg4: memref<1x128xf32, #tpu.memory_space<vmem>>, %arg5: memref<1x128xf32, #tpu.memory_space<vmem>>, %arg6: memref<128x128xbf16, #tpu.memory_space<vmem>>, %arg7: memref<1x128xf32, #tpu.memory_space<vmem>>, %arg8: memref<16x128xf32, #tpu.memory_space<vmem>>, %arg9: memref<16x128xbf16, #tpu.memory_space<vmem>>, %arg10: memref<16x128xbf16, #tpu.memory_space<vmem>>, %arg11: memref<2x16x128xf32, #tpu.memory_space<vmem>>, %arg12: memref<!tpu.dma_semaphore, #tpu.memory_space<semaphore_mem>>) attributes {dimension_semantics = [#tpu.dimension_semantics<arbitrary>, #tpu.dimension_semantics<arbitrary>], iteration_bounds = array<i64: 2, 2>, scalar_prefetch = 0 : i64, scratch_operands = 4 : i64, tpu.core_type = #tpu.core_type<tc>, window_params = [{}, {transform_indices = @transform_1, window_bounds = array<i64: 128, 128>}, {transform_indices = @transform_2, window_bounds = array<i64: 1, 128>}, {transform_indices = @transform_3, window_bounds = array<i64: 1, 128>}, {transform_indices = @transform_4, window_bounds = array<i64: 128, 128>}, {transform_indices = @transform_5, window_bounds = array<i64: 1, 128>}, {transform_indices = @transform_6, window_bounds = array<i64: 16, 128>}]} {
    %c0_i32 = arith.constant 0 : i32
    %0 = arith.cmpi eq, %arg0, %c0_i32 : i32
    %c0_i32_0 = arith.constant 0 : i32
    %1 = arith.cmpi eq, %arg1, %c0_i32_0 : i32
    %2 = arith.andi %0, %1 : i1
    %3 = arith.extui %2 : i1 to i32
    %c0_i32_1 = arith.constant 0 : i32
    %4 = arith.cmpi ne, %3, %c0_i32_1 : i32
    scf.if %4 {
      tpu.enqueue_dma source(%arg2 : memref<16x128xbf16, #tpu.memory_space<any>>) target(%arg9 : memref<16x128xbf16, #tpu.memory_space<vmem>>) target_semaphore(%arg12 : memref<!tpu.dma_semaphore, #tpu.memory_space<semaphore_mem>>)
      tpu.wait_dma2 semaphore(%arg12 : memref<!tpu.dma_semaphore, #tpu.memory_space<semaphore_mem>>) src(%arg2 : memref<16x128xbf16, #tpu.memory_space<any>>) dst(%arg9 : memref<16x128xbf16, #tpu.memory_space<vmem>>)
    } else {
    }
    %c0_i32_2 = arith.constant 0 : i32
    %5 = arith.cmpi eq, %arg1, %c0_i32_2 : i32
    %6 = arith.extui %5 : i1 to i32
    %c0_i32_3 = arith.constant 0 : i32
    %7 = arith.cmpi ne, %6, %c0_i32_3 : i32
    scf.if %7 {
      %c0_12 = arith.constant 0 : index
      %c0_13 = arith.constant 0 : index
      %20 = vector.load %arg9[%c0_12, %c0_13] : memref<16x128xbf16, #tpu.memory_space<vmem>>, vector<16x128xbf16>
      %c0_14 = arith.constant 0 : index
      %c0_15 = arith.constant 0 : index
      %21 = vector.load %arg3[%c0_14, %c0_15] : memref<128x128xbf16, #tpu.memory_space<vmem>>, vector<128x128xbf16>
      %cst_16 = arith.constant dense<0.000000e+00> : vector<16x128xf32>
      %22 = tpu.matmul %20, %21, %cst_16 {dimension_numbers = #tpu.dot_dimension_numbers<[1], [0], [0], [1], [0, 0, 1, 1], [], []>} : vector<16x128xbf16>, vector<128x128xbf16>, vector<16x128xf32> -> vector<16x128xf32>
      %cst_17 = arith.constant dense<0.000000e+00> : vector<128xf32>
      %23 = vector.multi_reduction <add>, %22, %cst_17 [0] : vector<16x128xf32> to vector<128xf32>
      %24 = vector.shape_cast %23 : vector<128xf32> to vector<1x128xf32>
      %cst_18 = arith.constant 0.0833333358 : f32
      %25 = vector.broadcast %cst_18 : f32 to vector<1x128xf32>
      %26 = arith.mulf %24, %25 : vector<1x128xf32>
      %27 = arith.mulf %22, %22 : vector<16x128xf32>
      %cst_19 = arith.constant dense<0.000000e+00> : vector<128xf32>
      %28 = vector.multi_reduction <add>, %27, %cst_19 [0] : vector<16x128xf32> to vector<128xf32>
      %29 = vector.shape_cast %28 : vector<128xf32> to vector<1x128xf32>
      %cst_20 = arith.constant 0.0833333358 : f32
      %30 = vector.broadcast %cst_20 : f32 to vector<1x128xf32>
      %31 = arith.mulf %29, %30 : vector<1x128xf32>
      %32 = arith.mulf %26, %26 : vector<1x128xf32>
      %33 = arith.subf %31, %32 : vector<1x128xf32>
      %cst_21 = arith.constant 0.000000e+00 : f32
      %34 = vector.broadcast %cst_21 : f32 to vector<1x128xf32>
      %35 = arith.maximumf %33, %34 : vector<1x128xf32>
      %c0_22 = arith.constant 0 : index
      %c0_23 = arith.constant 0 : index
      %36 = vector.load %arg4[%c0_22, %c0_23] : memref<1x128xf32, #tpu.memory_space<vmem>>, vector<1x128xf32>
      %cst_24 = arith.constant 9.99999974E-6 : f32
      %37 = vector.broadcast %cst_24 : f32 to vector<1x128xf32>
      %38 = arith.addf %35, %37 : vector<1x128xf32>
      %39 = math.rsqrt %38 : vector<1x128xf32>
      %40 = arith.mulf %36, %39 : vector<1x128xf32>
      %c0_25 = arith.constant 0 : index
      %c0_26 = arith.constant 0 : index
      %41 = vector.load %arg5[%c0_25, %c0_26] : memref<1x128xf32, #tpu.memory_space<vmem>>, vector<1x128xf32>
      %42 = arith.mulf %26, %40 : vector<1x128xf32>
      %43 = arith.subf %41, %42 : vector<1x128xf32>
      %44 = vector.broadcast %40 : vector<1x128xf32> to vector<16x128xf32>
      %45 = arith.mulf %22, %44 : vector<16x128xf32>
      %46 = vector.broadcast %43 : vector<1x128xf32> to vector<16x128xf32>
      %47 = arith.addf %45, %46 : vector<16x128xf32>
      %48 = arith.truncf %47 : vector<16x128xf32> to vector<16x128xbf16>
      %c0_27 = arith.constant 0 : index
      %c0_28 = arith.constant 0 : index
      %49 = vector.load %arg10[%c0_27, %c0_28] : memref<16x128xbf16, #tpu.memory_space<vmem>>, vector<16x128xbf16>
      tpu.vector_store %arg10[%c0_27, %c0_28], %48 {strides = array<i32>} : memref<16x128xbf16, #tpu.memory_space<vmem>>, vector<16x128xbf16>,
    } else {
    }
    %c0 = arith.constant 0 : index
    %c0_4 = arith.constant 0 : index
    %8 = vector.load %arg10[%c0, %c0_4] : memref<16x128xbf16, #tpu.memory_space<vmem>>, vector<16x128xbf16>
    %c0_5 = arith.constant 0 : index
    %c0_6 = arith.constant 0 : index
    %9 = vector.load %arg6[%c0_5, %c0_6] : memref<128x128xbf16, #tpu.memory_space<vmem>>, vector<128x128xbf16>
    %cst = arith.constant dense<0.000000e+00> : vector<16x128xf32>
    %10 = tpu.matmul %8, %9, %cst {dimension_numbers = #tpu.dot_dimension_numbers<[1], [0], [0], [1], [0, 0, 1, 1], [], []>} : vector<16x128xbf16>, vector<128x128xbf16>, vector<16x128xf32> -> vector<16x128xf32>
    %c0_i32_7 = arith.constant 0 : i32
    %11 = arith.cmpi eq, %arg0, %c0_i32_7 : i32
    %12 = arith.extui %11 : i1 to i32
    %c0_i32_8 = arith.constant 0 : i32
    %13 = arith.cmpi ne, %12, %c0_i32_8 : i32
    scf.if %13 {
      %20 = arith.index_cast %arg1 : i32 to index
      %c0_12 = arith.constant 0 : index
      %c0_13 = arith.constant 0 : index
      %21 = vector.load %arg11[%20, %c0_12, %c0_13] : memref<2x16x128xf32, #tpu.memory_space<vmem>>, vector<1x16x128xf32>
      %22 = vector.shape_cast %21 : vector<1x16x128xf32> to vector<16x128xf32>
      %23 = vector.shape_cast %10 : vector<16x128xf32> to vector<1x16x128xf32>
      tpu.vector_store %arg11[%20, %c0_12, %c0_13], %23 {strides = array<i32>} : memref<2x16x128xf32, #tpu.memory_space<vmem>>, vector<1x16x128xf32>,
    } else {
    }
    %c0_i32_9 = arith.constant 0 : i32
    %14 = arith.cmpi sgt, %arg0, %c0_i32_9 : i32
    %15 = arith.extui %14 : i1 to i32
    %c0_i32_10 = arith.constant 0 : i32
    %16 = arith.cmpi ne, %15, %c0_i32_10 : i32
    scf.if %16 {
      %20 = arith.index_cast %arg1 : i32 to index
      %c0_12 = arith.constant 0 : index
      %c0_13 = arith.constant 0 : index
      %21 = vector.load %arg11[%20, %c0_12, %c0_13] : memref<2x16x128xf32, #tpu.memory_space<vmem>>, vector<1x16x128xf32>
      %22 = vector.shape_cast %21 : vector<1x16x128xf32> to vector<16x128xf32>
      %23 = arith.addf %22, %10 : vector<16x128xf32>
      %24 = arith.index_cast %arg1 : i32 to index
      %c0_14 = arith.constant 0 : index
      %c0_15 = arith.constant 0 : index
      %25 = vector.load %arg11[%24, %c0_14, %c0_15] : memref<2x16x128xf32, #tpu.memory_space<vmem>>, vector<1x16x128xf32>
      %26 = vector.shape_cast %25 : vector<1x16x128xf32> to vector<16x128xf32>
      %27 = vector.shape_cast %23 : vector<16x128xf32> to vector<1x16x128xf32>
      tpu.vector_store %arg11[%24, %c0_14, %c0_15], %27 {strides = array<i32>} : memref<2x16x128xf32, #tpu.memory_space<vmem>>, vector<1x16x128xf32>,
    } else {
    }
    %c1_i32 = arith.constant 1 : i32
    %17 = arith.cmpi eq, %arg0, %c1_i32 : i32
    %18 = arith.extui %17 : i1 to i32
    %c0_i32_11 = arith.constant 0 : i32
    %19 = arith.cmpi ne, %18, %c0_i32_11 : i32
    scf.if %19 {
      %20 = arith.index_cast %arg1 : i32 to index
      %c0_12 = arith.constant 0 : index
      %c0_13 = arith.constant 0 : index
      %21 = vector.load %arg11[%20, %c0_12, %c0_13] : memref<2x16x128xf32, #tpu.memory_space<vmem>>, vector<1x16x128xf32>
      %22 = vector.shape_cast %21 : vector<1x16x128xf32> to vector<16x128xf32>
      %c0_14 = arith.constant 0 : index
      %c0_15 = arith.constant 0 : index
      %23 = vector.load %arg7[%c0_14, %c0_15] : memref<1x128xf32, #tpu.memory_space<vmem>>, vector<1x128xf32>
      %24 = vector.broadcast %23 : vector<1x128xf32> to vector<16x128xf32>
      %25 = arith.addf %22, %24 : vector<16x128xf32>
      %c0_16 = arith.constant 0 : index
      %c0_17 = arith.constant 0 : index
      %26 = vector.load %arg8[%c0_16, %c0_17] : memref<16x128xf32, #tpu.memory_space<vmem>>, vector<16x128xf32>
      tpu.vector_store %arg8[%c0_16, %c0_17], %25 {strides = array<i32>} : memref<16x128xf32, #tpu.memory_space<vmem>>, vector<16x128xf32>,
    } else {
    }
    return
  }
  func.func @transform_1(%arg0: i32, %arg1: i32) -> (i32, i32) {
    %c0_i32 = arith.constant 0 : i32
    %c0_i32_0 = arith.constant 0 : i32
    return %c0_i32, %arg0 : i32, i32
  }
  func.func @transform_2(%arg0: i32, %arg1: i32) -> (i32, i32) {
    %c0_i32 = arith.constant 0 : i32
    %c0_i32_0 = arith.constant 0 : i32
    return %c0_i32, %arg0 : i32, i32
  }
  func.func @transform_3(%arg0: i32, %arg1: i32) -> (i32, i32) {
    %c0_i32 = arith.constant 0 : i32
    %c0_i32_0 = arith.constant 0 : i32
    return %c0_i32, %arg0 : i32, i32
  }
  func.func @transform_4(%arg0: i32, %arg1: i32) -> (i32, i32) {
    %c0_i32 = arith.constant 0 : i32
    return %arg0, %arg1 : i32, i32
  }
  func.func @transform_5(%arg0: i32, %arg1: i32) -> (i32, i32) {
    %c0_i32 = arith.constant 0 : i32
    %c0_i32_0 = arith.constant 0 : i32
    return %c0_i32, %arg1 : i32, i32
  }
  func.func @transform_6(%arg0: i32, %arg1: i32) -> (i32, i32) {
    %c1_i32 = arith.constant 1 : i32
    %0 = arith.cmpi eq, %arg0, %c1_i32 : i32
    %c0_i32 = arith.constant 0 : i32
    %1 = arith.select %0, %arg1, %c0_i32 : i32
    %c0_i32_0 = arith.constant 0 : i32
    %c0_i32_1 = arith.constant 0 : i32
    return %c0_i32_0, %1 : i32, i32
  }
}

</mosaic_0001>

<llo_original>
// kernel: mlp_forward.1
$region0: #{mlp_forward.1}
  #allocation0 [shape = 'u32[]', space=smem, size = 0x4, offset = 0x4, fixed_abs, tag = 'smem constant byte address 0x4 - core index']
  #allocation1 [shape = 'u32[72,128]{1,0:T(1,128)}', space=vmem, size = 0x9000, scoped, tag = 'internal scratch']
  #allocation2 [shape = 'bf16[16,128]{1,0:T(8,128)(2,1)}', space=vmem, size = 0x1000, scoped, tag = 'scratch operand']
  #allocation3 [shape = 'bf16[16,128]{1,0:T(8,128)(2,1)}', space=vmem, size = 0x1000, scoped, tag = 'scratch operand']
  #allocation4 [shape = 'f32[2,16,128]{2,1,0:T(8,128)}', space=vmem, size = 0x4000, scoped, tag = 'scratch operand']
  #allocation5 [shape = 's32[1]{0}', space=sflag, size = 0x4, scoped, tag = 'scratch operand']
  #allocation12 [shape = 's32[]', space=sflag, size = 0x4, offset = 0, fixed_abs, tag = 'sflag constant byte address 0x0 - dummy sync flag']
  %s0 = inlined_call_operand.vmem [shape: bf16[16,128], index: 0, kind: input, shape index: {}]
  %s1 = inlined_call_operand.hbm [shape: bf16[128,256], index: 1, kind: input, shape index: {}]
  %s2 = inlined_call_operand.vmem [shape: f32[1,256], index: 2, kind: input, shape index: {}]
  %s3 = inlined_call_operand.vmem [shape: f32[1,256], index: 3, kind: input, shape index: {}]
  %s4 = inlined_call_operand.hbm [shape: bf16[256,256], index: 4, kind: input, shape index: {}]
  %s5 = inlined_call_operand.vmem [shape: f32[1,256], index: 5, kind: input, shape index: {}]
  %s6 = inlined_call_operand.hbm [shape: f32[16,256], index: 6, kind: output, shape index: {}]
  %s7 = sld [smem:[#allocation0]]
  $region115: #{mlp_forward.1} parent=0
    _
  %s9 = ssub.s32 1, %s7
  %s10 = scalar_select 0, %s9, %s7
  $region1: #{mlp_forward.1} parent=0
    #allocation6 [shape = 'u8[65536]{0}', space=vmem, size = 0x10000, scoped, tag = 'input window, operand 1']
    #allocation7 [shape = 's32[2]{0}', space=sflag, size = 0x8, scoped, tag = 'scoped memory for mlp_forward.1']
    #allocation8 [shape = 's32[2]{0}', space=sflag, size = 0x8, scoped, tag = 'scoped memory for mlp_forward.1']
    #allocation9 [shape = 'u8[65536]{0}', space=vmem, size = 0x10000, scoped, tag = 'input window, operand 4']
    #allocation10 [shape = 's32[2]{0}', space=sflag, size = 0x8, scoped, tag = 'scoped memory for mlp_forward.1']
    #allocation11 [shape = 'u8[16384]{0}', space=vmem, size = 0x4000, scoped, tag = 'output window, operand 0']
    %11 = vsyncpa [#allocation7], 0
    %s12 = scalar_lea.sflag [#allocation7], 1
    %13 = vsyncpa %s12, 0
    %14 = vsyncpa [#allocation10], 0
    %s15 = scalar_lea.sflag [#allocation10], 1
    %16 = vsyncpa %s15, 0
    %17 = vsyncpa [#allocation8], 0
    %s18 = scalar_lea.sflag [#allocation8], 1
    %19 = vsyncpa %s18, 0
    loop: start=0, step=1, limit=6
    $region2: #{mlp_forward.1} parent=1 // loop_pre_header
      _
    $region3: #{mlp_forward.1} parent=1 // loop_header
      %s21 = sphi 0, %s25
      %p22 = scmp.ge.s32.totalorder %s21, 6
      %s28 = sphi 0, %s40
      %s29 = sphi 0, %s36
      %s30 = sphi 0, %s28
      %s31 = sphi 0, %s29
      %s32 = sphi 0, %s30
      %s33 = sphi 0, %s31
      %s43 = sphi 0, %s45
      %s46 = sphi 0, %s43
      %s47 = sphi 0, %s46
      %s63 = sphi 0, %s47
      %s69 = sphi 0, %s71
      %s72 = sphi 0, %s69
      %s73 = sphi 0, %s72
      %s89 = sphi 0, %s73
      %s95 = sphi 0, %s97
      %s98 = sphi 0, %s95
      %s99 = sphi 0, %s98
      %s115 = sphi 0, %s99
      %s123 = sphi 0, %s125
      %s126 = sphi 0, %s123
      %s127 = sphi 0, %s126
      %s143 = sphi 0, %s127
      %s149 = sphi 0, %s151
      %s152 = sphi 0, %s149
      %s153 = sphi 0, %s152
      %s169 = sphi 0, %s153
      %s179 = sphi 0, %s181
      %s182 = sphi 0, %s179
      %s183 = sphi 0, %s182
      %s199 = sphi 0, %s183
    $region4: #{mlp_forward.1} parent=1 // loop_header_branch
      %24 = sbr.rel (%p22) target = $region8
    $region5: #{mlp_forward.1} parent=1 // loop_body
      %s26 = ssub.s32 %s21, 1
      %s27 = ssub.s32 %s21, 2
      %s34 = sadd.s32 1, %s29
      %p35 = scmp.ge.s32.totalorder %s34, 2
      %s36 = scalar_select %p35, 0, %s34
      %s37 = sadd.s32 1, %s28
      %s38 = scalar_select %p35, %s37, %s28
      %p39 = scmp.ge.s32.totalorder %s38, 2
      %s40 = scalar_select %p39, 0, %s38
      %s41 = ssub.s32 %s28, %s40
      %p42 = scmp.eq.s32.totalorder %s41, 0
      %s44 = sadd.s32 %s43, 1
      %s45 = scalar_select %p42, %s43, %s44
      %p48 = pneg %p42
      %p49 = scmp.eq.s32.totalorder %s21, 3
      %p50 = por %p48, %p49
      %p51 = scmp.ne.s32.totalorder %s43, %s46
      %p52 = scmp.eq.s32.totalorder %s21, 0
      %p53 = por %p51, %p52
      %p54 = scmp.ne.s32.totalorder %s43, %s46
      %p55 = scmp.eq.s32.totalorder %s26, 3
      %p56 = por %p54, %p55
      %p57 = scmp.ne.s32.totalorder %s46, %s47
      %p58 = scmp.eq.s32.totalorder %s26, 0
      %p59 = por %p57, %p58
      %p60 = scmp.ne.s32.totalorder %s46, %s47
      %p61 = scmp.eq.s32.totalorder %s27, 3
      %p62 = por %p60, %p61
      %p64 = scmp.ne.s32.totalorder %s47, %s63
      %p65 = scmp.eq.s32.totalorder %s27, 0
      %p66 = por %p64, %p65
      %s67 = ssub.s32 %s28, %s40
      %p68 = scmp.eq.s32.totalorder %s67, 0
      %s70 = sadd.s32 %s69, 1
      %s71 = scalar_select %p68, %s69, %s70
      %p74 = pneg %p68
      %p75 = scmp.eq.s32.totalorder %s21, 3
      %p76 = por %p74, %p75
      %p77 = scmp.ne.s32.totalorder %s69, %s72
      %p78 = scmp.eq.s32.totalorder %s21, 0
      %p79 = por %p77, %p78
      %p80 = scmp.ne.s32.totalorder %s69, %s72
      %p81 = scmp.eq.s32.totalorder %s26, 3
      %p82 = por %p80, %p81
      %p83 = scmp.ne.s32.totalorder %s72, %s73
      %p84 = scmp.eq.s32.totalorder %s26, 0
      %p85 = por %p83, %p84
      %p86 = scmp.ne.s32.totalorder %s72, %s73
      %p87 = scmp.eq.s32.totalorder %s27, 3
      %p88 = por %p86, %p87
      %p90 = scmp.ne.s32.totalorder %s73, %s89
      %p91 = scmp.eq.s32.totalorder %s27, 0
      %p92 = por %p90, %p91
      %s93 = ssub.s32 %s28, %s40
      %p94 = scmp.eq.s32.totalorder %s93, 0
      %s96 = sadd.s32 %s95, 1
      %s97 = scalar_select %p94, %s95, %s96
      %p100 = pneg %p94
      %p101 = scmp.eq.s32.totalorder %s21, 3
      %p102 = por %p100, %p101
      %p103 = scmp.ne.s32.totalorder %s95, %s98
      %p104 = scmp.eq.s32.totalorder %s21, 0
      %p105 = por %p103, %p104
      %p106 = scmp.ne.s32.totalorder %s95, %s98
      %p107 = scmp.eq.s32.totalorder %s26, 3
      %p108 = por %p106, %p107
      %p109 = scmp.ne.s32.totalorder %s98, %s99
      %p110 = scmp.eq.s32.totalorder %s26, 0
      %p111 = por %p109, %p110
      %p112 = scmp.ne.s32.totalorder %s98, %s99
      %p113 = scmp.eq.s32.totalorder %s27, 3
      %p114 = por %p112, %p113
      %p116 = scmp.ne.s32.totalorder %s99, %s115
      %p117 = scmp.eq.s32.totalorder %s27, 0
      %p118 = por %p116, %p117
      %s119 = ssub.s32 %s28, %s40
      %s120 = ssub.s32 %s29, %s36
      %s121 = sor.u32 %s119, %s120
      %p122 = scmp.eq.s32.totalorder %s121, 0
      %s124 = sadd.s32 %s123, 1
      %s125 = scalar_select %p122, %s123, %s124
      %p128 = pneg %p122
      %p129 = scmp.eq.s32.totalorder %s21, 3
      %p130 = por %p128, %p129
      %p131 = scmp.ne.s32.totalorder %s123, %s126
      %p132 = scmp.eq.s32.totalorder %s21, 0
      %p133 = por %p131, %p132
      %p134 = scmp.ne.s32.totalorder %s123, %s126
      %p135 = scmp.eq.s32.totalorder %s26, 3
      %p136 = por %p134, %p135
      %p137 = scmp.ne.s32.totalorder %s126, %s127
      %p138 = scmp.eq.s32.totalorder %s26, 0
      %p139 = por %p137, %p138
      %p140 = scmp.ne.s32.totalorder %s126, %s127
      %p141 = scmp.eq.s32.totalorder %s27, 3
      %p142 = por %p140, %p141
      %p144 = scmp.ne.s32.totalorder %s127, %s143
      %p145 = scmp.eq.s32.totalorder %s27, 0
      %p146 = por %p144, %p145
      %s147 = ssub.s32 %s29, %s36
      %p148 = scmp.eq.s32.totalorder %s147, 0
      %s150 = sadd.s32 %s149, 1
      %s151 = scalar_select %p148, %s149, %s150
      %p154 = pneg %p148
      %p155 = scmp.eq.s32.totalorder %s21, 3
      %p156 = por %p154, %p155
      %p157 = scmp.ne.s32.totalorder %s149, %s152
      %p158 = scmp.eq.s32.totalorder %s21, 0
      %p159 = por %p157, %p158
      %p160 = scmp.ne.s32.totalorder %s149, %s152
      %p161 = scmp.eq.s32.totalorder %s26, 3
      %p162 = por %p160, %p161
      %p163 = scmp.ne.s32.totalorder %s152, %s153
      %p164 = scmp.eq.s32.totalorder %s26, 0
      %p165 = por %p163, %p164
      %p166 = scmp.ne.s32.totalorder %s152, %s153
      %p167 = scmp.eq.s32.totalorder %s27, 3
      %p168 = por %p166, %p167
      %p170 = scmp.ne.s32.totalorder %s153, %s169
      %p171 = scmp.eq.s32.totalorder %s27, 0
      %p172 = por %p170, %p171
      %p173 = scmp.eq.s32.totalorder %s28, 1
      %s174 = scalar_select %p173, %s29, 0
      %p175 = scmp.eq.s32.totalorder %s40, 1
      %s176 = scalar_select %p175, %s36, 0
      %s177 = ssub.s32 %s174, %s176
      %p178 = scmp.eq.s32.totalorder %s177, 0
      %s180 = sadd.s32 %s179, 1
      %s181 = scalar_select %p178, %s179, %s180
      %p184 = pneg %p178
      %p185 = scmp.eq.s32.totalorder %s21, 3
      %p186 = por %p184, %p185
      %p187 = scmp.ne.s32.totalorder %s179, %s182
      %p188 = scmp.eq.s32.totalorder %s21, 0
      %p189 = por %p187, %p188
      %p190 = scmp.ne.s32.totalorder %s179, %s182
      %p191 = scmp.eq.s32.totalorder %s26, 3
      %p192 = por %p190, %p191
      %p193 = scmp.ne.s32.totalorder %s182, %s183
      %p194 = scmp.eq.s32.totalorder %s26, 0
      %p195 = por %p193, %p194
      %p196 = scmp.ne.s32.totalorder %s182, %s183
      %p197 = scmp.eq.s32.totalorder %s27, 3
      %p198 = por %p196, %p197
      %p200 = scmp.ne.s32.totalorder %s183, %s199
      %p201 = scmp.eq.s32.totalorder %s27, 0
      %p202 = por %p200, %p201
      %p203 = scmp.le.s32.totalorder 1, %s21
      %p204 = scmp.lt.s32.totalorder %s21, 5
      %p205 = pnand %p203, %p204
      %p206 = pneg %p205
      // Predicated region
      $region9: #{mlp_forward.1} parent=5 // pred_check
        _
      $region10: #{mlp_forward.1} parent=5 // pred_check_branch
        %208 = sbr.rel (%p205) target = $region12
      $region11: #{mlp_forward.1} parent=5 // pred_region
        %s209 = ssub.s32 %s21, 1
      $region12: #{mlp_forward.1} parent=5 // pred_fallthru
        _
      %p210 = scmp.lt.s32.totalorder %s21, 4
      // Predicated region
      $region13: #{mlp_forward.1} parent=5 // pred_check
        %p211 = pneg %p210
      $region14: #{mlp_forward.1} parent=5 // pred_check_branch
        %213 = sbr.rel (%p211) target = $region16
      $region15: #{mlp_forward.1} parent=5 // pred_region
        // Predicated region
        $region17: #{mlp_forward.1} parent=15 // pred_check
          %p214 = pneg %p53
        $region18: #{mlp_forward.1} parent=15 // pred_check_branch
          %216 = sbr.rel (%p214) target = $region20
        $region19: #{mlp_forward.1} parent=15 // pred_region
          %s217 = sand.u32 %s43, 1
          %s218 = scalar_lea.sflag [#allocation7], %s217
          %s219 = sand.u32 %s43, 1
          %s220 = smul.addr %s219, 64
          %s221 = scalar_lea.vmem [#allocation6], %s220
          %223 = vsyncadd %s218, 0
          %s224 = smul.addr %s28, 4
          %s225 = scalar_lea.hbm %s1, %s224
          %s226 = sshll.u32 %s225, 4
          %s227 = int_to_ptr.hbm [resolvable:$true] %s226
          %s228 = sshll.u32 %s221, 4
          %s229 = int_to_ptr.vmem [resolvable:$true] %s228
          %234 = dma.hbm_to_vmem [thread:$0]  %s227, 1024, %s229, %s218, 128, 64, 4
        $region20: #{mlp_forward.1} parent=15 // pred_fallthru
          _
        // Predicated region
        $region21: #{mlp_forward.1} parent=15 // pred_check
          %p235 = pneg %p79
        $region22: #{mlp_forward.1} parent=15 // pred_check_branch
          %237 = sbr.rel (%p235) target = $region24
        $region23: #{mlp_forward.1} parent=15 // pred_region
          %p238 = scmp.lt.s32.totalorder %s28, 1
          %s239 = scalar_select %p238, %s28, 1
          %s240 = scalar_lea.vmem %s2, %s239
        $region24: #{mlp_forward.1} parent=15 // pred_fallthru
          _
        // Predicated region
        $region25: #{mlp_forward.1} parent=15 // pred_check
          %p241 = pneg %p105
        $region26: #{mlp_forward.1} parent=15 // pred_check_branch
          %243 = sbr.rel (%p241) target = $region28
        $region27: #{mlp_forward.1} parent=15 // pred_region
          %p244 = scmp.lt.s32.totalorder %s28, 1
          %s245 = scalar_select %p244, %s28, 1
          %s246 = scalar_lea.vmem %s3, %s245
        $region28: #{mlp_forward.1} parent=15 // pred_fallthru
          _
        // Predicated region
        $region29: #{mlp_forward.1} parent=15 // pred_check
          %p247 = pneg %p133
        $region30: #{mlp_forward.1} parent=15 // pred_check_branch
          %249 = sbr.rel (%p247) target = $region32
        $region31: #{mlp_forward.1} parent=15 // pred_region
          %s250 = sand.u32 %s123, 1
          %s251 = scalar_lea.sflag [#allocation10], %s250
          %s252 = sand.u32 %s123, 1
          %s253 = smul.addr %s252, 64
          %s254 = scalar_lea.vmem [#allocation9], %s253
          %s255 = smul.u32 16, %s28
          %257 = vsyncadd %s251, 0
          %s258 = smul.addr %s255, 2
          %s259 = sadd.s32 %s29, %s258
          %s260 = smul.addr %s259, 4
          %s261 = scalar_lea.hbm %s4, %s260
          %s262 = sshll.u32 %s261, 4
          %s263 = int_to_ptr.hbm [resolvable:$true] %s262
          %s264 = sshll.u32 %s254, 4
          %s265 = int_to_ptr.vmem [resolvable:$true] %s264
          %270 = dma.hbm_to_vmem [thread:$0]  %s263, 1024, %s265, %s251, 128, 64, 4
        $region32: #{mlp_forward.1} parent=15 // pred_fallthru
          _
        // Predicated region
        $region33: #{mlp_forward.1} parent=15 // pred_check
          %p271 = pneg %p159
        $region34: #{mlp_forward.1} parent=15 // pred_check_branch
          %273 = sbr.rel (%p271) target = $region36
        $region35: #{mlp_forward.1} parent=15 // pred_region
          %p274 = scmp.lt.s32.totalorder %s29, 1
          %s275 = scalar_select %p274, %s29, 1
          %s276 = scalar_lea.vmem %s5, %s275
        $region36: #{mlp_forward.1} parent=15 // pred_fallthru
          _
      $region16: #{mlp_forward.1} parent=5 // pred_fallthru
        _
      %p277 = scmp.le.s32.totalorder 1, %s21
      %p278 = scmp.lt.s32.totalorder %s21, 5
      %p279 = pnand %p277, %p278
      %p280 = pneg %p279
      // Predicated region
      $region37: #{mlp_forward.1} parent=5 // pred_check
        _
      $region38: #{mlp_forward.1} parent=5 // pred_check_branch
        %282 = sbr.rel (%p279) target = $region40
      $region39: #{mlp_forward.1} parent=5 // pred_region
        %s283 = ssub.s32 %s21, 1
        %s284 = sand.u32 %s46, 1
        %s285 = scalar_lea.sflag [#allocation7], %s284
        %s286 = sand.u32 %s46, 1
        %s287 = smul.addr %s286, 64
        %s288 = scalar_lea.vmem [#allocation6], %s287
        // Predicated region
        $region41: #{mlp_forward.1} parent=39 // pred_check
          %p289 = pneg %p59
        $region42: #{mlp_forward.1} parent=39 // pred_check_branch
          %291 = sbr.rel (%p289) target = $region44
        $region43: #{mlp_forward.1} parent=39 // pred_region
          %293 = dma.done %s285, 1024
        $region44: #{mlp_forward.1} parent=39 // pred_fallthru
          _
        %s294 = sand.u32 %s126, 1
        %s295 = scalar_lea.sflag [#allocation10], %s294
        %s296 = sand.u32 %s126, 1
        %s297 = smul.addr %s296, 64
        %s298 = scalar_lea.vmem [#allocation9], %s297
        // Predicated region
        $region45: #{mlp_forward.1} parent=39 // pred_check
          %p299 = pneg %p139
        $region46: #{mlp_forward.1} parent=39 // pred_check_branch
          %301 = sbr.rel (%p299) target = $region48
        $region47: #{mlp_forward.1} parent=39 // pred_region
          %303 = dma.done %s295, 1024
        $region48: #{mlp_forward.1} parent=39 // pred_fallthru
          _
        %s304 = sand.u32 %s46, 1
        %s305 = scalar_lea.sflag [#allocation7], %s304
        %s306 = sand.u32 %s46, 1
        %s307 = smul.addr %s306, 64
        %s308 = scalar_lea.vmem [#allocation6], %s307
        %p309 = pneg %p59
        %p310 = pneg %p56
        %p311 = scmp.lt.s32.totalorder %s30, 1
        %s312 = scalar_select %p311, %s30, 1
        %s313 = scalar_lea.vmem %s2, %s312
        %p314 = pneg %p85
        %p315 = pneg %p82
        %p316 = scmp.lt.s32.totalorder %s30, 1
        %s317 = scalar_select %p316, %s30, 1
        %s318 = scalar_lea.vmem %s3, %s317
        %p319 = pneg %p111
        %p320 = pneg %p108
        %s321 = sand.u32 %s126, 1
        %s322 = scalar_lea.sflag [#allocation10], %s321
        %s323 = sand.u32 %s126, 1
        %s324 = smul.addr %s323, 64
        %s325 = scalar_lea.vmem [#allocation9], %s324
        %p326 = pneg %p139
        %p327 = pneg %p136
        %p328 = scmp.lt.s32.totalorder %s31, 1
        %s329 = scalar_select %p328, %s31, 1
        %s330 = scalar_lea.vmem %s5, %s329
        %p331 = pneg %p165
        %p332 = pneg %p162
        %p333 = pneg %p195
        %p334 = pneg %p192
        %s335 = sand.u32 %s182, 1
        %s336 = scalar_lea.sflag [#allocation8], %s335
        %s337 = sand.u32 %s182, 1
        %s338 = smul.addr %s337, 16
        %s339 = scalar_lea.vmem [#allocation11], %s338
        %p340 = scmp.lt.s32.totalorder %s30, 1
        %s341 = scalar_select %p340, %s30, 1
        %s342 = scalar_lea.vmem %s2, %s341
        %p343 = scmp.lt.s32.totalorder %s30, 1
        %s344 = scalar_select %p343, %s30, 1
        %s345 = scalar_lea.vmem %s3, %s344
        %s346 = smul.u32 16, %s30
        %p347 = scmp.lt.s32.totalorder %s31, 1
        %s348 = scalar_select %p347, %s31, 1
        %s349 = scalar_lea.vmem %s5, %s348
        %p350 = scmp.eq.s32.totalorder %s30, 1
        %s351 = scalar_select %p350, %s31, 0
        %p352 = scmp.eq.s32.totalorder %s30, 0
        %p353 = scmp.eq.s32.totalorder %s31, 0
        %p354 = pnand %p352, %p353
        %p355 = pneg %p354
        // Predicated region
        $region49: #{mlp_forward.1} parent=39 // pred_check
          _
        $region50: #{mlp_forward.1} parent=39 // pred_check_branch
          %357 = sbr.rel (%p354) target = $region52
        $region51: #{mlp_forward.1} parent=39 // pred_region
          // Predicated region
          $region53: #{mlp_forward.1} parent=51 // pred_check
            _
          $region54: #{mlp_forward.1} parent=51 // pred_check_branch
            %359 = sbr.rel (0) target = $region56
          $region55: #{mlp_forward.1} parent=51 // pred_region
            // Predicated region
            $region68: #{mlp_forward.1} parent=55 // pred_check
              _
            $region69: #{mlp_forward.1} parent=55 // pred_check_branch
              %375 = sbr.rel (0) target = $region71
            $region70: #{mlp_forward.1} parent=55 // pred_region
              loop: start=0, step=1, limit=1
              $region72: #{mlp_forward.1} parent=70 // loop_pre_header
                _
              $region73: #{mlp_forward.1} parent=70 // loop_header
                %s377 = sphi 0, %s381
                %p378 = scmp.ge.s32.totalorder %s377, 1
                %s382 = sphi %s0, %s0
                %s383 = sphi [#allocation2], [#allocation2]
              $region74: #{mlp_forward.1} parent=70 // loop_header_branch
                %380 = sbr.rel (%p378) target = $region78
              $region75: #{mlp_forward.1} parent=70 // loop_body
                %v384 = vld [vmem:[%s382] sm:$0xff]
                %385 = vst [vmem:[%s383] sm:$0xff] %v384
              $region76: #{mlp_forward.1} parent=70 // loop_footer
                %s381 = sadd.s32 1, %s377
              $region77: #{mlp_forward.1} parent=70 // loop_footer_branch
                %376 = sbr.rel target = $region73
              $region78: #{mlp_forward.1} parent=70 // loop_exit
                _
            $region71: #{mlp_forward.1} parent=55 // pred_fallthru
              _
            // Predicated region
            $region79: #{mlp_forward.1} parent=55 // pred_check
              _
            $region80: #{mlp_forward.1} parent=55 // pred_check_branch
              %387 = sbr.rel target = $region82
            $region81: #{mlp_forward.1} parent=55 // pred_region
              _
            $region82: #{mlp_forward.1} parent=55 // pred_fallthru
              _
          $region56: #{mlp_forward.1} parent=51 // pred_fallthru
            _
          // Predicated region
          $region57: #{mlp_forward.1} parent=51 // pred_check
            _
          $region58: #{mlp_forward.1} parent=51 // pred_check_branch
            %361 = sbr.rel target = $region60
          $region59: #{mlp_forward.1} parent=51 // pred_region
            %s363 = ssub.s32 256, 1
            loop: start=0, step=1, limit=1
            $region61: #{mlp_forward.1} parent=59 // loop_pre_header
              _
            $region62: #{mlp_forward.1} parent=59 // loop_header
              %s365 = sphi 0, %s369
              %p366 = scmp.ge.s32.totalorder %s365, 1
              %s370 = sphi %s0, %s0
              %s371 = sphi [#allocation2], [#allocation2]
            $region63: #{mlp_forward.1} parent=59 // loop_header_branch
              %368 = sbr.rel (%p366) target = $region67
            $region64: #{mlp_forward.1} parent=59 // loop_body
              %v372 = vld [vmem:[%s370] sm:%s363]
              %373 = vst [vmem:[%s371] sm:%s363] %v372
            $region65: #{mlp_forward.1} parent=59 // loop_footer
              %s369 = sadd.s32 1, %s365
            $region66: #{mlp_forward.1} parent=59 // loop_footer_branch
              %364 = sbr.rel target = $region62
            $region67: #{mlp_forward.1} parent=59 // loop_exit
              _
          $region60: #{mlp_forward.1} parent=51 // pred_fallthru
            _
          // Predicated region
          $region83: #{mlp_forward.1} parent=51 // pred_check
            _
          $region84: #{mlp_forward.1} parent=51 // pred_check_branch
            %390 = sbr.rel (0) target = $region86
          $region85: #{mlp_forward.1} parent=51 // pred_region
            %391 = vsyncadd [#allocation5], 128
          $region86: #{mlp_forward.1} parent=51 // pred_fallthru
            _
          %s392 = smul.u32 4, 2
          %s393 = smul.u32 %s392, 1
          %s394 = sshll.u32 %s393, 4
          %395 = dma.done [#allocation5], %s394
        $region52: #{mlp_forward.1} parent=39 // pred_fallthru
          _
        // Predicated region
        $region87: #{mlp_forward.1} parent=39 // pred_check
          %p396 = pneg %p353
        $region88: #{mlp_forward.1} parent=39 // pred_check_branch
          %398 = sbr.rel (%p396) target = $region90
        $region89: #{mlp_forward.1} parent=39 // pred_region
          %v399 = vld [vmem:[#allocation2] sm:$0xf]
          %v400 = vld [vmem:[#allocation2 + $0x4] sm:$0xf]
          %v401 = vld [vmem:[%s288] sm:$0xf]
          %v402 = vld [vmem:[%s288 + $0x4] sm:$0xf]
          %v403 = vld [vmem:[%s288 + $0x8] sm:$0xf]
          %v404 = vld [vmem:[%s288 + $0xc] sm:$0xf]
          %v405 = vld [vmem:[%s288 + $0x10] sm:$0xf]
          %v406 = vld [vmem:[%s288 + $0x14] sm:$0xf]
          %v407 = vld [vmem:[%s288 + $0x18] sm:$0xf]
          %v408 = vld [vmem:[%s288 + $0x1c] sm:$0xf]
          %v409 = vld [vmem:[%s288 + $0x20] sm:$0xf]
          %v410 = vld [vmem:[%s288 + $0x24] sm:$0xf]
          %v411 = vld [vmem:[%s288 + $0x28] sm:$0xf]
          %v412 = vld [vmem:[%s288 + $0x2c] sm:$0xf]
          %v413 = vld [vmem:[%s288 + $0x30] sm:$0xf]
          %v414 = vld [vmem:[%s288 + $0x34] sm:$0xf]
          %v415 = vld [vmem:[%s288 + $0x38] sm:$0xf]
          %v416 = vld [vmem:[%s288 + $0x3c] sm:$0xf]
          %v419 = vunpack.c.l.b16 %v399
          %v420 = vunpack.c.l.b16 %v400
          %v421 = vpack.c.b16 %v420, %v419
          %v439 = vunpack.c.l.b16 %v401
          %v440 = vunpack.c.l.b16 %v402
          %v441 = vunpack.c.l.b16 %v403
          %v442 = vunpack.c.l.b16 %v404
          %v443 = vunpack.c.l.b16 %v405
          %v444 = vunpack.c.l.b16 %v406
          %v445 = vunpack.c.l.b16 %v407
          %v446 = vunpack.c.l.b16 %v408
          %v447 = vunpack.c.l.b16 %v409
          %v448 = vunpack.c.l.b16 %v410
          %v449 = vunpack.c.l.b16 %v411
          %v450 = vunpack.c.l.b16 %v412
          %v451 = vunpack.c.l.b16 %v413
          %v452 = vunpack.c.l.b16 %v414
          %v453 = vunpack.c.l.b16 %v415
          %v454 = vunpack.c.l.b16 %v416
          %v455 = vpack.c.b16 %v440, %v439
          %v456 = vpack.c.b16 %v442, %v441
          %v457 = vpack.c.b16 %v444, %v443
          %v458 = vpack.c.b16 %v446, %v445
          %v459 = vpack.c.b16 %v448, %v447
          %v460 = vpack.c.b16 %v450, %v449
          %v461 = vpack.c.b16 %v452, %v451
          %v462 = vpack.c.b16 %v454, %v453
          %471 = vmatpush.bf16.msra.mxu0 %v462
          %472 = vmatpush.bf16.msra.mxu0 %v461
          %473 = vmatpush.bf16.msra.mxu0 %v460
          %474 = vmatpush.bf16.msra.mxu0 %v459
          %475 = vmatpush.bf16.msra.mxu0 %v458
          %476 = vmatpush.bf16.msra.mxu0 %v457
          %477 = vmatpush.bf16.msra.mxu0 %v456
          %478 = vmatpush.bf16.msra.mxu0 %v455
          %479 = vmatmul.bf16.gmra.mxu0 %v421
          %v480 = vpop.f32.mrf.mxu0
          %v481 = vadd.f32 0.0, %v480
          %v482 = vpop.f32.mrf.mxu0
          %v483 = vadd.f32 0.0, %v482
          %484 = vdwg.mxu0
          %v485 = vadd.f32 %v481, %v483
          %v486 = vrot.slane %v485, 4
          %v487 = vadd.f32 %v485, %v486
          %v488 = vrot.slane %v487, 2
          %v489 = vadd.f32 %v487, %v488
          %v490 = vrot.slane %v489, 1
          %v491 = vadd.f32 %v489, %v490
          %v492 = vmul.f32 %v491, 0.083333336
          %v493 = vmul.f32 %v481, %v481
          %v494 = vmul.f32 %v483, %v483
          %v495 = vadd.f32 %v493, %v494
          %v496 = vrot.slane %v495, 4
          %v497 = vadd.f32 %v495, %v496
          %v498 = vrot.slane %v497, 2
          %v499 = vadd.f32 %v497, %v498
          %v500 = vrot.slane %v499, 1
          %v501 = vadd.f32 %v499, %v500
          %v502 = vmul.f32 %v501, 0.083333336
          %v503 = vmul.f32 %v492, %v492
          %v504 = vsub.f32 %v502, %v503
          %v505 = vmax.f32 %v504, 0.0
          %v506 = vld [vmem:[%s342] sm:$0x1]
          %v507 = vadd.f32 %v505, 1e-05
          %v508 = vrsqrt.pop %v507
          %v509 = vmul.f32 %v508, %v507
          %v510 = vmul.f32 %v509, %v508
          %v511 = vmul.f32 0.5, %v510
          %v512 = vsub.f32 1.5, %v511
          %v513 = vmul.f32 %v508, %v512
          %vm514 = vweird.f32 %v507
          %vm515 = vweird.f32 %v508
          %vm516 = vmor %vm514, %vm515
          %v517 = vsel %vm516, %v508, %v513
          %v518 = vmul.f32 %v506, %v517
          %v519 = vld [vmem:[%s345] sm:$0x1]
          %v520 = vmul.f32 %v492, %v518
          %v521 = vsub.f32 %v519, %v520
          %v523 = vperm.slane %v518, 0
          %v525 = vmul.f32 %v481, %v523
          %v526 = vmul.f32 %v483, %v523
          %v528 = vperm.slane %v521, 0
          %v530 = vadd.f32 %v525, %v528
          %v531 = vadd.f32 %v526, %v528
          %v532 = vpack.c.bf16 %v530, %v530
          %v533 = vpack.c.bf16 %v531, %v531
          %534 = vst [vmem:[#allocation3] sm:$0xf] %v532
          %535 = vst [vmem:[#allocation3 + $0x4] sm:$0xf] %v533
        $region90: #{mlp_forward.1} parent=39 // pred_fallthru
          _
        %v536 = vld [vmem:[#allocation3] sm:$0xf]
        %v537 = vld [vmem:[#allocation3 + $0x4] sm:$0xf]
        %v538 = vld [vmem:[%s298] sm:$0xf]
        %v539 = vld [vmem:[%s298 + $0x4] sm:$0xf]
        %v540 = vld [vmem:[%s298 + $0x8] sm:$0xf]
        %v541 = vld [vmem:[%s298 + $0xc] sm:$0xf]
        %v542 = vld [vmem:[%s298 + $0x10] sm:$0xf]
        %v543 = vld [vmem:[%s298 + $0x14] sm:$0xf]
        %v544 = vld [vmem:[%s298 + $0x18] sm:$0xf]
        %v545 = vld [vmem:[%s298 + $0x1c] sm:$0xf]
        %v546 = vld [vmem:[%s298 + $0x20] sm:$0xf]
        %v547 = vld [vmem:[%s298 + $0x24] sm:$0xf]
        %v548 = vld [vmem:[%s298 + $0x28] sm:$0xf]
        %v549 = vld [vmem:[%s298 + $0x2c] sm:$0xf]
        %v550 = vld [vmem:[%s298 + $0x30] sm:$0xf]
        %v551 = vld [vmem:[%s298 + $0x34] sm:$0xf]
        %v552 = vld [vmem:[%s298 + $0x38] sm:$0xf]
        %v553 = vld [vmem:[%s298 + $0x3c] sm:$0xf]
        %v556 = vunpack.c.l.b16 %v536
        %v557 = vunpack.c.l.b16 %v537
        %v558 = vpack.c.b16 %v557, %v556
        %v576 = vunpack.c.l.b16 %v538
        %v577 = vunpack.c.l.b16 %v539
        %v578 = vunpack.c.l.b16 %v540
        %v579 = vunpack.c.l.b16 %v541
        %v580 = vunpack.c.l.b16 %v542
        %v581 = vunpack.c.l.b16 %v543
        %v582 = vunpack.c.l.b16 %v544
        %v583 = vunpack.c.l.b16 %v545
        %v584 = vunpack.c.l.b16 %v546
        %v585 = vunpack.c.l.b16 %v547
        %v586 = vunpack.c.l.b16 %v548
        %v587 = vunpack.c.l.b16 %v549
        %v588 = vunpack.c.l.b16 %v550
        %v589 = vunpack.c.l.b16 %v551
        %v590 = vunpack.c.l.b16 %v552
        %v591 = vunpack.c.l.b16 %v553
        %v592 = vpack.c.b16 %v577, %v576
        %v593 = vpack.c.b16 %v579, %v578
        %v594 = vpack.c.b16 %v581, %v580
        %v595 = vpack.c.b16 %v583, %v582
        %v596 = vpack.c.b16 %v585, %v584
        %v597 = vpack.c.b16 %v587, %v586
        %v598 = vpack.c.b16 %v589, %v588
        %v599 = vpack.c.b16 %v591, %v590
        %608 = vmatpush.bf16.msra.mxu0 %v599
        %609 = vmatpush.bf16.msra.mxu0 %v598
        %610 = vmatpush.bf16.msra.mxu0 %v597
        %611 = vmatpush.bf16.msra.mxu0 %v596
        %612 = vmatpush.bf16.msra.mxu0 %v595
        %613 = vmatpush.bf16.msra.mxu0 %v594
        %614 = vmatpush.bf16.msra.mxu0 %v593
        %615 = vmatpush.bf16.msra.mxu0 %v592
        %616 = vmatmul.bf16.gmra.mxu0 %v558
        %v617 = vpop.f32.mrf.mxu0
        %v618 = vadd.f32 0.0, %v617
        %v619 = vpop.f32.mrf.mxu0
        %v620 = vadd.f32 0.0, %v619
        %621 = vdwg.mxu0
        // Predicated region
        $region91: #{mlp_forward.1} parent=39 // pred_check
          %p622 = pneg %p352
        $region92: #{mlp_forward.1} parent=39 // pred_check_branch
          %624 = sbr.rel (%p622) target = $region94
        $region93: #{mlp_forward.1} parent=39 // pred_region
          %s625 = smul.u32 %s31, 16
          %s626 = scalar_lea.vmem [#allocation4], %s625
          %627 = vst [vmem:[%s626] sm:$0xff] %v618
          %628 = vst [vmem:[%s626 + $0x8] sm:$0xff] %v620
        $region94: #{mlp_forward.1} parent=39 // pred_fallthru
          _
        %p629 = scmp.gt.s32.totalorder %s30, 0
        // Predicated region
        $region95: #{mlp_forward.1} parent=39 // pred_check
          %p630 = pneg %p629
        $region96: #{mlp_forward.1} parent=39 // pred_check_branch
          %632 = sbr.rel (%p630) target = $region98
        $region97: #{mlp_forward.1} parent=39 // pred_region
          %s633 = smul.u32 %s31, 16
          %s634 = scalar_lea.vmem [#allocation4], %s633
          %v635 = vld [vmem:[%s634] sm:$0xff]
          %v636 = vld [vmem:[%s634 + $0x8] sm:$0xff]
          %v637 = vadd.f32 %v635, %v618
          %v638 = vadd.f32 %v636, %v620
          %639 = vst [vmem:[%s634] sm:$0xff] %v637
          %640 = vst [vmem:[%s634 + $0x8] sm:$0xff] %v638
        $region98: #{mlp_forward.1} parent=39 // pred_fallthru
          _
        %p641 = scmp.eq.s32.totalorder %s30, 1
        // Predicated region
        $region99: #{mlp_forward.1} parent=39 // pred_check
          %p642 = pneg %p641
        $region100: #{mlp_forward.1} parent=39 // pred_check_branch
          %644 = sbr.rel (%p642) target = $region102
        $region101: #{mlp_forward.1} parent=39 // pred_region
          %s645 = smul.u32 %s31, 16
          %s646 = scalar_lea.vmem [#allocation4], %s645
          %v647 = vld [vmem:[%s646] sm:$0xff]
          %v648 = vld [vmem:[%s646 + $0x8] sm:$0xff]
          %v649 = vld [vmem:[%s349] sm:$0x1]
          %v651 = vperm.slane %v649, 0
          %v653 = vadd.f32 %v647, %v651
          %v654 = vadd.f32 %v648, %v651
          %655 = vst [vmem:[%s339] sm:$0xff] %v653
          %656 = vst [vmem:[%s339 + $0x8] sm:$0xff] %v654
        $region102: #{mlp_forward.1} parent=39 // pred_fallthru
          _
        %s657 = sand.u32 %s182, 1
        %s658 = scalar_lea.sflag [#allocation8], %s657
        %s659 = sand.u32 %s182, 1
        %s660 = smul.addr %s659, 16
        %s661 = scalar_lea.vmem [#allocation11], %s660
        // Predicated region
        $region103: #{mlp_forward.1} parent=39 // pred_check
          %p662 = pneg %p192
        $region104: #{mlp_forward.1} parent=39 // pred_check_branch
          %664 = sbr.rel (%p662) target = $region106
        $region105: #{mlp_forward.1} parent=39 // pred_region
          %p665 = scmp.eq.s32.totalorder %s30, 1
          %s666 = scalar_select %p665, %s31, 0
          %668 = vsyncadd %s658, 0
          %s669 = smul.addr %s666, 8
          %s670 = scalar_lea.hbm %s6, %s669
          %s671 = sshll.u32 %s661, 4
          %s672 = int_to_ptr.vmem [resolvable:$true] %s671
          %s673 = sshll.u32 %s670, 4
          %s674 = int_to_ptr.hbm [resolvable:$true] %s673
          %679 = dma.vmem_to_hbm [thread:$0]  %s672, 256, %s674, %s658, 128, 256, 8
        $region106: #{mlp_forward.1} parent=39 // pred_fallthru
          _
      $region40: #{mlp_forward.1} parent=5 // pred_fallthru
        _
      %p680 = scmp.le.s32.totalorder 2, %s21
      // Predicated region
      $region107: #{mlp_forward.1} parent=5 // pred_check
        %p681 = pneg %p680
      $region108: #{mlp_forward.1} parent=5 // pred_check_branch
        %683 = sbr.rel (%p681) target = $region110
      $region109: #{mlp_forward.1} parent=5 // pred_region
        %s684 = ssub.s32 %s21, 2
        // Predicated region
        $region111: #{mlp_forward.1} parent=109 // pred_check
          %p685 = pneg %p198
        $region112: #{mlp_forward.1} parent=109 // pred_check_branch
          %687 = sbr.rel (%p685) target = $region114
        $region113: #{mlp_forward.1} parent=109 // pred_region
          %s688 = sand.u32 %s183, 1
          %s689 = scalar_lea.sflag [#allocation8], %s688
          %s690 = sand.u32 %s183, 1
          %s691 = smul.addr %s690, 16
          %s692 = scalar_lea.vmem [#allocation11], %s691
          %694 = dma.done %s689, 256
        $region114: #{mlp_forward.1} parent=109 // pred_fallthru
          _
      $region110: #{mlp_forward.1} parent=5 // pred_fallthru
        _
    $region6: #{mlp_forward.1} parent=1 // loop_footer
      %s25 = sadd.s32 1, %s21
    $region7: #{mlp_forward.1} parent=1 // loop_footer_branch
      %20 = sbr.rel target = $region3
    $region8: #{mlp_forward.1} parent=1 // loop_exit
      _
    %695 = vsyncpa [#allocation7], 1
    %s696 = scalar_lea.sflag [#allocation7], 1
    %697 = vsyncpa %s696, 1
    %698 = vsyncpa [#allocation10], 1
    %s699 = scalar_lea.sflag [#allocation10], 1
    %700 = vsyncpa %s699, 1
    %701 = vsyncpa [#allocation8], 1
    %s702 = scalar_lea.sflag [#allocation8], 1
    %703 = vsyncpa %s702, 1
  %704 = vsyncmov [#allocation5]
  %s705 = vpop.sfrf %704
  %p706 = scmp.eq.s32.totalorder %s705, 0
  %p707 = pneg %p706
  %709 = shalt.err (%p707)

</llo_original>
